<compile_context>
chip_gen: v6e
topology: v6e:2x2x1
jax: 0.10.0
libtpu: 0.0.40
codegen_flags: <defaults>
</compile_context>

<pallas_src>
import math
import functools

import jax
import jax.numpy as jnp
from jax import lax
from jax.experimental import pallas as pl
from jax.experimental.pallas import tpu as pltpu


# ---------------------------------------------------------------------------
# config (small, synthetic)
# ---------------------------------------------------------------------------
HIDDEN = 32
NUM_HEADS = 4
NUM_KV_HEADS = 2
HEAD_DIM = HIDDEN // NUM_HEADS          # 8
KV_HIDDEN = NUM_KV_HEADS * HEAD_DIM     # 16
NUM_GROUPS = NUM_HEADS // NUM_KV_HEADS  # 2
ROPE_THETA = 10000.0
BATCH = 2
SEQ = 8


# ---------------------------------------------------------------------------
# kernel: one grid step per batch element (parallel axis)
# ---------------------------------------------------------------------------
def llama_attn_kernel(lens_ref, x_ref, cos_ref, sin_ref,
                      wq_ref, wk_ref, wv_ref, wo_ref, o_ref,
                      *, seq, num_heads, num_kv_heads, head_dim):
    S, d = seq, head_dim
    G = num_heads // num_kv_heads
    scale = 1.0 / math.sqrt(d)
    bf = jnp.bfloat16
    f32 = jnp.float32

    bi = pl.program_id(0)
    len_b = lens_ref[bi]                       # valid tokens for this batch (SMEM scalar)

    x = x_ref[...]                             # (S, H) bf16

    # --- projections: one MXU matmul each over all tokens of this batch ------
    q_all = jnp.dot(x, wq_ref[...], preferred_element_type=f32)    # (S, NH*d)
    k_all = jnp.dot(x, wk_ref[...], preferred_element_type=f32)    # (S, NKV*d)
    v_all = jnp.dot(x, wv_ref[...], preferred_element_type=f32)    # (S, NKV*d)

    # --- per-kv-head grouped layout; K/V are NOT duplicated for GQA ----------
    # q_g[kv, g*S + s, :] = q_all[s, (kv*G+g)*d : (kv*G+g+1)*d]
    # (static toy-size slices; at head_dim=128 use lane-aligned reshape/einshape)
    q_g = jnp.stack(
        [jnp.concatenate(
            [q_all[:, (kv * G + g) * d:(kv * G + g + 1) * d] for g in range(G)],
            axis=0)
         for kv in range(num_kv_heads)], axis=0)                    # (NKV, G*S, d)
    k_g = jnp.stack(
        [k_all[:, kv * d:(kv + 1) * d] for kv in range(num_kv_heads)], axis=0)  # (NKV, S, d)
    v_g = jnp.stack(
        [v_all[:, kv * d:(kv + 1) * d] for kv in range(num_kv_heads)], axis=0)  # (NKV, S, d)

    # --- RoPE on the grouped layout (f32); cos/sin broadcast over kv heads ---
    cos = cos_ref[...]                         # (S, d) f32
    sin = sin_ref[...]
    cos_q = jnp.concatenate([cos] * G, axis=0)[None]    # (1, G*S, d)
    sin_q = jnp.concatenate([sin] * G, axis=0)[None]

    def rot_half(t):                           # rotate_half on the last (lane) dim
        return jnp.concatenate([-t[..., d // 2:], t[..., :d // 2]], axis=-1)

    q_rope = q_g * cos_q + rot_half(q_g) * sin_q
    k_rope = k_g * cos[None] + rot_half(k_g) * sin[None]

    # softmax scale folded into q before the bf16 downcast
    q_b = (q_rope * scale).astype(bf)
    k_b = k_rope.astype(bf)
    v_b = v_g.astype(bf)

    # --- masks from 1-D iotas + SMEM length scalar (no (T,T) int32 passes) ---
    qpos = lax.broadcasted_iota(jnp.int32, (G * S, 1), 0) % S       # query token index
    kpos = lax.broadcasted_iota(jnp.int32, (1, S), 1)               # key token index
    valid = jnp.logical_and(qpos >= kpos, kpos < len_b)             # (G*S, S) causal & key-valid

    # --- attention, batched over kv heads ------------------------------------
    scores = jnp.einsum('hqd,hkd->hqk', q_b, k_b,
                        preferred_element_type=f32)                 # (NKV, G*S, S) f32
    scores = jnp.where(valid[None], scores, jnp.float32(-1e30))     # mask in f32 only
    m = jnp.max(scores, axis=-1, keepdims=True)
    p = jnp.exp(scores - m)
    denom = jnp.sum(p, axis=-1, keepdims=True)                      # (NKV, G*S, 1)
    ctx = jnp.einsum('hqk,hkd->hqd', p.astype(bf), v_b,
                     preferred_element_type=f32)                    # (NKV, G*S, d)
    ctx = ctx * pl.reciprocal(denom, approx=True)                   # EUP slot

    # --- repack heads, zero padded query rows (pad_input), o_proj ------------
    context = jnp.concatenate(
        [ctx[h // G, (h % G) * S:(h % G + 1) * S, :] for h in range(num_heads)],
        axis=-1)                                                    # (S, H) f32
    q_valid = lax.broadcasted_iota(jnp.int32, (S, 1), 0) < len_b    # (S, 1)
    context = jnp.where(q_valid, context, 0.0)

    out = jnp.dot(context.astype(bf), wo_ref[...],
                  preferred_element_type=f32)                       # (S, H) f32 acc
    o_ref[...] = out.astype(o_ref.dtype)                            # bf16 writeback


# ---------------------------------------------------------------------------
# wrapper
# ---------------------------------------------------------------------------
@jax.jit
def llama_attention(hidden_states, attention_mask, cos, sin, wq, wk, wv, wo):
    B, S, H = hidden_states.shape
    d = cos.shape[-1]
    kvh = wk.shape[-1]
    T = B * S
    bf = jnp.bfloat16

    # right-padded mask -> per-batch valid length (scalar prefetch, SMEM)
    lens = jnp.sum(attention_mask.astype(jnp.int32), axis=-1)       # (B,)

    # flatten tokens (free HBM-side reshapes); matmul operands in bf16
    x2d = hidden_states.reshape(T, H).astype(bf)
    cos2d = cos.reshape(T, d).astype(jnp.float32)
    sin2d = sin.reshape(T, d).astype(jnp.float32)
    wq_b, wk_b, wv_b, wo_b = (w.astype(bf) for w in (wq, wk, wv, wo))

    kernel = functools.partial(
        llama_attn_kernel, seq=S,
        num_heads=NUM_HEADS, num_kv_heads=NUM_KV_HEADS, head_dim=HEAD_DIM)

    grid_spec = pltpu.PrefetchScalarGridSpec(
        num_scalar_prefetch=1,
        grid=(B,),
        in_specs=[
            pl.BlockSpec((S, H), lambda b, _lens: (b, 0)),      # x   (per-batch tokens)
            pl.BlockSpec((S, d), lambda b, _lens: (b, 0)),      # cos
            pl.BlockSpec((S, d), lambda b, _lens: (b, 0)),      # sin
            pl.BlockSpec((H, H), lambda b, _lens: (0, 0)),      # wq (constant block: no re-DMA)
            pl.BlockSpec((H, kvh), lambda b, _lens: (0, 0)),    # wk
            pl.BlockSpec((H, kvh), lambda b, _lens: (0, 0)),    # wv
            pl.BlockSpec((H, H), lambda b, _lens: (0, 0)),      # wo
        ],
        out_specs=pl.BlockSpec((S, H), lambda b, _lens: (b, 0)),
    )

    # advisory cost hint so XLA schedules surrounding ops sensibly
    flops = 2 * T * H * (2 * H + 2 * kvh) + 4 * NUM_HEADS * B * S * S * HEAD_DIM
    transcendentals = NUM_HEADS * B * S * S
    bytes_accessed = (2 * x2d.size + 4 * cos2d.size + 4 * sin2d.size
                      + 2 * (wq.size + wk.size + wv.size + wo.size)
                      + 2 * T * H + 4 * B)
    cost = pl.CostEstimate(flops=flops, transcendentals=transcendentals,
                           bytes_accessed=bytes_accessed)

    out2d = pl.pallas_call(
        kernel,
        out_shape=jax.ShapeDtypeStruct((T, H), bf),
        grid_spec=grid_spec,
        cost_estimate=cost,
        compiler_params=pltpu.CompilerParams(
            dimension_semantics=("parallel",)),                 # v7x: one batch per TC
    )(lens, x2d, cos2d, sin2d, wq_b, wk_b, wv_b, wo_b)

    return out2d.reshape(B, S, H)


# ---------------------------------------------------------------------------
# pure-JAX reference (same math & same mixed precision) for a sanity check
# ---------------------------------------------------------------------------
def _rotate_half(x):
    dd = x.shape[-1]
    return jnp.concatenate([-x[..., dd // 2:], x[..., : dd // 2]], axis=-1)


def reference(hidden_states, attention_mask, cos, sin, wq, wk, wv, wo):
    B, S, H = hidden_states.shape
    d = HEAD_DIM
    bf = jnp.bfloat16
    x = hidden_states.astype(bf)
    q = jnp.dot(x, wq.astype(bf), preferred_element_type=jnp.float32)
    k = jnp.dot(x, wk.astype(bf), preferred_element_type=jnp.float32)
    v = jnp.dot(x, wv.astype(bf), preferred_element_type=jnp.float32)
    q = q.reshape(B, S, NUM_HEADS, d)
    k = k.reshape(B, S, NUM_KV_HEADS, d)
    v = v.reshape(B, S, NUM_KV_HEADS, d)
    c = cos[:, :, None, :]
    s = sin[:, :, None, :]
    q = q * c + _rotate_half(q) * s
    k = k * c + _rotate_half(k) * s
    k = jnp.repeat(k, NUM_GROUPS, axis=2)
    v = jnp.repeat(v, NUM_GROUPS, axis=2)
    scale = 1.0 / math.sqrt(d)
    qb = (q * scale).astype(bf)
    kb = k.astype(bf)
    vb = v.astype(bf)
    scores = jnp.einsum("bqhd,bkhd->bhqk", qb, kb, preferred_element_type=jnp.float32)
    causal = jnp.tril(jnp.ones((S, S), dtype=bool))
    keymask = attention_mask[:, None, None, :] > 0
    valid = jnp.logical_and(causal[None, None], keymask)
    scores = jnp.where(valid, scores, -1e30)
    m = scores.max(-1, keepdims=True)
    p = jnp.exp(scores - m)
    denom = p.sum(-1, keepdims=True)
    ctx = jnp.einsum("bhqk,bkhd->bhqd", p.astype(bf), vb,
                     preferred_element_type=jnp.float32)
    ctx = ctx / denom
    ctx = ctx.transpose(0, 2, 1, 3).reshape(B, S, H)
    ctx = ctx * attention_mask[:, :, None].astype(jnp.float32)
    out = jnp.dot(ctx.astype(bf), wo.astype(bf), preferred_element_type=jnp.float32)
    return out.astype(jnp.bfloat16)


# ---------------------------------------------------------------------------
# main
# ---------------------------------------------------------------------------
if __name__ == "__main__":
    key = jax.random.PRNGKey(0)
    kx, kq, kk, kv, ko = jax.random.split(key, 5)

    hidden_states = jax.random.normal(kx, (BATCH, SEQ, HIDDEN), dtype=jnp.float32)

    # deterministic "Linear" weights, stored [in, out]
    wq = jax.random.normal(kq, (HIDDEN, HIDDEN), dtype=jnp.float32) * 0.05
    wk = jax.random.normal(kk, (HIDDEN, KV_HIDDEN), dtype=jnp.float32) * 0.05
    wv = jax.random.normal(kv, (HIDDEN, KV_HIDDEN), dtype=jnp.float32) * 0.05
    wo = jax.random.normal(ko, (HIDDEN, HIDDEN), dtype=jnp.float32) * 0.05

    # attention_mask: batch 0 fully valid, batch 1 has 2 padded tokens at the end
    attention_mask = jnp.array(
        [[1] * SEQ,
         [1] * (SEQ - 2) + [0] * 2], dtype=jnp.int32)

    # RoPE cos/sin, shape (B, S, head_dim)
    inv_freq = 1.0 / (ROPE_THETA ** (jnp.arange(0, HEAD_DIM, 2, dtype=jnp.float32) / HEAD_DIM))
    pos = jnp.arange(SEQ, dtype=jnp.float32)
    freqs = pos[:, None] * inv_freq[None, :]                 # (S, d/2)
    emb = jnp.concatenate([freqs, freqs], axis=-1)           # (S, d)
    cos = jnp.broadcast_to(jnp.cos(emb), (BATCH, SEQ, HEAD_DIM))
    sin = jnp.broadcast_to(jnp.sin(emb), (BATCH, SEQ, HEAD_DIM))

    out = llama_attention(hidden_states, attention_mask, cos, sin, wq, wk, wv, wo)
    out = jax.block_until_ready(out)

    ref = reference(hidden_states, attention_mask, cos, sin, wq, wk, wv, wo)
    assert out.shape == (BATCH, SEQ, HIDDEN)
    # bf16 output + approx reciprocal => compare in f32 with bf16-ULP tolerance
    assert jnp.allclose(out.astype(jnp.float32), ref.astype(jnp.float32),
                        atol=2e-2, rtol=2e-2), "mismatch vs reference"

    print("KERNEL_OK")
</pallas_src>

<mosaic_0001>
module attributes {stable_mosaic.version = 11 : i64} {
  func.func @llama_attn_kernel(%arg0: i32, %arg1: memref<2xi32, #tpu.memory_space<smem>>, %arg2: memref<8x32xbf16, #tpu.memory_space<vmem>>, %arg3: memref<8x8xf32, #tpu.memory_space<vmem>>, %arg4: memref<8x8xf32, #tpu.memory_space<vmem>>, %arg5: memref<32x32xbf16, #tpu.memory_space<vmem>>, %arg6: memref<32x16xbf16, #tpu.memory_space<vmem>>, %arg7: memref<32x16xbf16, #tpu.memory_space<vmem>>, %arg8: memref<32x32xbf16, #tpu.memory_space<vmem>>, %arg9: memref<8x32xbf16, #tpu.memory_space<vmem>>) attributes {dimension_semantics = [#tpu.dimension_semantics<parallel>], iteration_bounds = array<i64: 2>, scalar_prefetch = 1 : i64, scratch_operands = 0 : i64, tpu.core_type = #tpu.core_type<tc>, window_params = [{transform_indices = @transform_0, window_bounds = array<i64: 8, 32>}, {transform_indices = @transform_1, window_bounds = array<i64: 8, 8>}, {transform_indices = @transform_2, window_bounds = array<i64: 8, 8>}, {pipeline_mode = #tpu.pipeline_mode<synchronous>, transform_indices = @transform_3, window_bounds = array<i64: 32, 32>}, {pipeline_mode = #tpu.pipeline_mode<synchronous>, transform_indices = @transform_4, window_bounds = array<i64: 32, 16>}, {pipeline_mode = #tpu.pipeline_mode<synchronous>, transform_indices = @transform_5, window_bounds = array<i64: 32, 16>}, {pipeline_mode = #tpu.pipeline_mode<synchronous>, transform_indices = @transform_6, window_bounds = array<i64: 32, 32>}, {transform_indices = @transform_7, window_bounds = array<i64: 8, 32>}]} {
    %0 = arith.index_cast %arg0 : i32 to index
    %1 = memref.load %arg1[%0] : memref<2xi32, #tpu.memory_space<smem>>
    %c0 = arith.constant 0 : index
    %c0_0 = arith.constant 0 : index
    %2 = vector.load %arg2[%c0, %c0_0] : memref<8x32xbf16, #tpu.memory_space<vmem>>, vector<8x32xbf16>
    %c0_1 = arith.constant 0 : index
    %c0_2 = arith.constant 0 : index
    %3 = vector.load %arg5[%c0_1, %c0_2] : memref<32x32xbf16, #tpu.memory_space<vmem>>, vector<32x32xbf16>
    %cst = arith.constant dense<0.000000e+00> : vector<8x32xf32>
    %4 = tpu.matmul %2, %3, %cst {dimension_numbers = #tpu.dot_dimension_numbers<[1], [0], [0], [1], [0, 0, 1, 1], [], []>} : vector<8x32xbf16>, vector<32x32xbf16>, vector<8x32xf32> -> vector<8x32xf32>
    %c0_3 = arith.constant 0 : index
    %c0_4 = arith.constant 0 : index
    %5 = vector.load %arg6[%c0_3, %c0_4] : memref<32x16xbf16, #tpu.memory_space<vmem>>, vector<32x16xbf16>
    %cst_5 = arith.constant dense<0.000000e+00> : vector<8x16xf32>
    %6 = tpu.matmul %2, %5, %cst_5 {dimension_numbers = #tpu.dot_dimension_numbers<[1], [0], [0], [1], [0, 0, 1, 1], [], []>} : vector<8x32xbf16>, vector<32x16xbf16>, vector<8x16xf32> -> vector<8x16xf32>
    %c0_6 = arith.constant 0 : index
    %c0_7 = arith.constant 0 : index
    %7 = vector.load %arg7[%c0_6, %c0_7] : memref<32x16xbf16, #tpu.memory_space<vmem>>, vector<32x16xbf16>
    %cst_8 = arith.constant dense<0.000000e+00> : vector<8x16xf32>
    %8 = tpu.matmul %2, %7, %cst_8 {dimension_numbers = #tpu.dot_dimension_numbers<[1], [0], [0], [1], [0, 0, 1, 1], [], []>} : vector<8x32xbf16>, vector<32x16xbf16>, vector<8x16xf32> -> vector<8x16xf32>
    %9 = vector.extract_strided_slice %4 {offsets = [0, 0], sizes = [8, 8], strides = [1, 1]} : vector<8x32xf32> to vector<8x8xf32>
    %10 = vector.extract_strided_slice %4 {offsets = [0, 8], sizes = [8, 8], strides = [1, 1]} : vector<8x32xf32> to vector<8x8xf32>
    %11 = tpu.concatenate %9, %10 in 0 : vector<8x8xf32>, vector<8x8xf32> -> vector<16x8xf32>
    %12 = vector.extract_strided_slice %4 {offsets = [0, 16], sizes = [8, 8], strides = [1, 1]} : vector<8x32xf32> to vector<8x8xf32>
    %13 = vector.extract_strided_slice %4 {offsets = [0, 24], sizes = [8, 8], strides = [1, 1]} : vector<8x32xf32> to vector<8x8xf32>
    %14 = tpu.concatenate %12, %13 in 0 : vector<8x8xf32>, vector<8x8xf32> -> vector<16x8xf32>
    %15 = vector.shape_cast %11 : vector<16x8xf32> to vector<1x16x8xf32>
    %16 = vector.shape_cast %14 : vector<16x8xf32> to vector<1x16x8xf32>
    %17 = tpu.concatenate %15, %16 in 0 : vector<1x16x8xf32>, vector<1x16x8xf32> -> vector<2x16x8xf32>
    %18 = vector.extract_strided_slice %6 {offsets = [0, 0], sizes = [8, 8], strides = [1, 1]} : vector<8x16xf32> to vector<8x8xf32>
    %19 = vector.extract_strided_slice %6 {offsets = [0, 8], sizes = [8, 8], strides = [1, 1]} : vector<8x16xf32> to vector<8x8xf32>
    %20 = vector.shape_cast %18 : vector<8x8xf32> to vector<1x8x8xf32>
    %21 = vector.shape_cast %19 : vector<8x8xf32> to vector<1x8x8xf32>
    %22 = tpu.concatenate %20, %21 in 0 : vector<1x8x8xf32>, vector<1x8x8xf32> -> vector<2x8x8xf32>
    %23 = vector.extract_strided_slice %8 {offsets = [0, 0], sizes = [8, 8], strides = [1, 1]} : vector<8x16xf32> to vector<8x8xf32>
    %24 = vector.extract_strided_slice %8 {offsets = [0, 8], sizes = [8, 8], strides = [1, 1]} : vector<8x16xf32> to vector<8x8xf32>
    %25 = vector.shape_cast %23 : vector<8x8xf32> to vector<1x8x8xf32>
    %26 = vector.shape_cast %24 : vector<8x8xf32> to vector<1x8x8xf32>
    %27 = tpu.concatenate %25, %26 in 0 : vector<1x8x8xf32>, vector<1x8x8xf32> -> vector<2x8x8xf32>
    %c0_9 = arith.constant 0 : index
    %c0_10 = arith.constant 0 : index
    %28 = vector.load %arg3[%c0_9, %c0_10] : memref<8x8xf32, #tpu.memory_space<vmem>>, vector<8x8xf32>
    %c0_11 = arith.constant 0 : index
    %c0_12 = arith.constant 0 : index
    %29 = vector.load %arg4[%c0_11, %c0_12] : memref<8x8xf32, #tpu.memory_space<vmem>>, vector<8x8xf32>
    %30 = tpu.concatenate %28, %28 in 0 : vector<8x8xf32>, vector<8x8xf32> -> vector<16x8xf32>
    %31 = vector.shape_cast %30 : vector<16x8xf32> to vector<1x16x8xf32>
    %32 = tpu.concatenate %29, %29 in 0 : vector<8x8xf32>, vector<8x8xf32> -> vector<16x8xf32>
    %33 = vector.shape_cast %32 : vector<16x8xf32> to vector<1x16x8xf32>
    %34 = vector.broadcast %31 : vector<1x16x8xf32> to vector<2x16x8xf32>
    %35 = arith.mulf %17, %34 : vector<2x16x8xf32>
    %36 = vector.extract_strided_slice %17 {offsets = [0, 0, 4], sizes = [2, 16, 4], strides = [1, 1, 1]} : vector<2x16x8xf32> to vector<2x16x4xf32>
    %cst_13 = arith.constant 0.000000e+00 : f32
    %37 = vector.broadcast %cst_13 : f32 to vector<2x16x4xf32>
    %38 = arith.subf %37, %36 : vector<2x16x4xf32>
    %39 = vector.extract_strided_slice %17 {offsets = [0, 0, 0], sizes = [2, 16, 4], strides = [1, 1, 1]} : vector<2x16x8xf32> to vector<2x16x4xf32>
    %40 = tpu.concatenate %38, %39 in 2 : vector<2x16x4xf32>, vector<2x16x4xf32> -> vector<2x16x8xf32>
    %41 = vector.broadcast %33 : vector<1x16x8xf32> to vector<2x16x8xf32>
    %42 = arith.mulf %40, %41 : vector<2x16x8xf32>
    %43 = arith.addf %35, %42 : vector<2x16x8xf32>
    %44 = vector.shape_cast %28 : vector<8x8xf32> to vector<1x8x8xf32>
    %45 = vector.broadcast %44 : vector<1x8x8xf32> to vector<2x8x8xf32>
    %46 = arith.mulf %22, %45 : vector<2x8x8xf32>
    %47 = vector.extract_strided_slice %22 {offsets = [0, 0, 4], sizes = [2, 8, 4], strides = [1, 1, 1]} : vector<2x8x8xf32> to vector<2x8x4xf32>
    %cst_14 = arith.constant 0.000000e+00 : f32
    %48 = vector.broadcast %cst_14 : f32 to vector<2x8x4xf32>
    %49 = arith.subf %48, %47 : vector<2x8x4xf32>
    %50 = vector.extract_strided_slice %22 {offsets = [0, 0, 0], sizes = [2, 8, 4], strides = [1, 1, 1]} : vector<2x8x8xf32> to vector<2x8x4xf32>
    %51 = tpu.concatenate %49, %50 in 2 : vector<2x8x4xf32>, vector<2x8x4xf32> -> vector<2x8x8xf32>
    %52 = vector.shape_cast %29 : vector<8x8xf32> to vector<1x8x8xf32>
    %53 = vector.broadcast %52 : vector<1x8x8xf32> to vector<2x8x8xf32>
    %54 = arith.mulf %51, %53 : vector<2x8x8xf32>
    %55 = arith.addf %46, %54 : vector<2x8x8xf32>
    %cst_15 = arith.constant 0.353553385 : f32
    %56 = vector.broadcast %cst_15 : f32 to vector<2x16x8xf32>
    %57 = arith.mulf %43, %56 : vector<2x16x8xf32>
    %58 = arith.truncf %57 : vector<2x16x8xf32> to vector<2x16x8xbf16>
    %59 = arith.truncf %55 : vector<2x8x8xf32> to vector<2x8x8xbf16>
    %60 = arith.truncf %27 : vector<2x8x8xf32> to vector<2x8x8xbf16>
    %61 = tpu.iota {dimensions = array<i32: 0>} : vector<16x1xi32>
    %c8_i32 = arith.constant 8 : i32
    %c0_i32 = arith.constant 0 : i32
    %62 = arith.cmpi eq, %c8_i32, %c0_i32 : i32
    %c1_i32 = arith.constant 1 : i32
    %63 = arith.select %62, %c1_i32, %c8_i32 : i32
    %64 = vector.broadcast %63 : i32 to vector<16x1xi32>
    %65 = arith.remsi %61, %64 : vector<16x1xi32>
    %c0_i32_16 = arith.constant 0 : i32
    %66 = vector.broadcast %c0_i32_16 : i32 to vector<16x1xi32>
    %67 = arith.cmpi ne, %65, %66 : vector<16x1xi32>
    %c0_i32_17 = arith.constant 0 : i32
    %68 = vector.broadcast %c0_i32_17 : i32 to vector<16x1xi32>
    %69 = arith.cmpi slt, %65, %68 : vector<16x1xi32>
    %c0_i32_18 = arith.constant 0 : i32
    %70 = arith.cmpi slt, %63, %c0_i32_18 : i32
    %71 = vector.broadcast %70 : i1 to vector<16x1xi1>
    %72 = vector.broadcast %71 : vector<16x1xi1> to vector<16x1xi1>
    %73 = arith.xori %69, %72 : vector<16x1xi1>
    %74 = arith.andi %73, %67 : vector<16x1xi1>
    %75 = vector.broadcast %63 : i32 to vector<16x1xi32>
    %76 = arith.addi %65, %75 : vector<16x1xi32>
    %77 = arith.select %74, %76, %65 : vector<16x1xi1>, vector<16x1xi32>
    %78 = tpu.iota {dimensions = array<i32: 1>} : vector<1x8xi32>
    %79 = vector.broadcast %77 : vector<16x1xi32> to vector<16x8xi32>
    %80 = vector.broadcast %78 : vector<1x8xi32> to vector<16x8xi32>
    %81 = arith.cmpi sge, %79, %80 : vector<16x8xi32>
    %82 = vector.broadcast %1 : i32 to vector<1x8xi32>
    %83 = arith.cmpi slt, %78, %82 : vector<1x8xi32>
    %84 = vector.broadcast %83 : vector<1x8xi1> to vector<16x8xi1>
    %85 = arith.andi %81, %84 : vector<16x8xi1>
    "tpu.trace_start"() <{level = 10 : i32, message = "hqd,hkd->hqk"}> : () -> ()
    %cst_19 = arith.constant dense<0.000000e+00> : vector<2x16x8xf32>
    %86 = tpu.matmul %58, %59, %cst_19 {dimension_numbers = #tpu.dot_dimension_numbers<[2], [2], [1], [1], [0, 0, 0, 1, 1, 1], [0], [0]>} : vector<2x16x8xbf16>, vector<2x8x8xbf16>, vector<2x16x8xf32> -> vector<2x16x8xf32>
    "tpu.trace_stop"() : () -> ()
    %87 = vector.shape_cast %85 : vector<16x8xi1> to vector<1x16x8xi1>
    %cst_20 = arith.constant -1.000000e+30 : f32
    %88 = vector.shape_cast %87 : vector<1x16x8xi1> to vector<1x16x8xi1>
    %89 = vector.broadcast %88 : vector<1x16x8xi1> to vector<2x16x8xi1>
    %90 = vector.broadcast %cst_20 : f32 to vector<2x16x8xf32>
    %91 = arith.select %89, %86, %90 : vector<2x16x8xi1>, vector<2x16x8xf32>
    %cst_21 = arith.constant dense<0xFF800000> : vector<2x16xf32>
    %92 = vector.multi_reduction <maximumf>, %91, %cst_21 [2] : vector<2x16x8xf32> to vector<2x16xf32>
    %93 = vector.shape_cast %92 : vector<2x16xf32> to vector<2x16x1xf32>
    %94 = vector.broadcast %93 : vector<2x16x1xf32> to vector<2x16x8xf32>
    %95 = arith.subf %91, %94 : vector<2x16x8xf32>
    %96 = math.exp %95 : vector<2x16x8xf32>
    %cst_22 = arith.constant dense<0.000000e+00> : vector<2x16xf32>
    %97 = vector.multi_reduction <add>, %96, %cst_22 [2] : vector<2x16x8xf32> to vector<2x16xf32>
    %98 = vector.shape_cast %97 : vector<2x16xf32> to vector<2x16x1xf32>
    %99 = arith.truncf %96 : vector<2x16x8xf32> to vector<2x16x8xbf16>
    "tpu.trace_start"() <{level = 10 : i32, message = "hqk,hkd->hqd"}> : () -> ()
    %cst_23 = arith.constant dense<0.000000e+00> : vector<2x16x8xf32>
    %100 = tpu.matmul %99, %60, %cst_23 {dimension_numbers = #tpu.dot_dimension_numbers<[2], [1], [1], [2], [0, 0, 0, 1, 1, 2], [0], [0]>} : vector<2x16x8xbf16>, vector<2x8x8xbf16>, vector<2x16x8xf32> -> vector<2x16x8xf32>
    "tpu.trace_stop"() : () -> ()
    %101 = tpu.reciprocal %98 {approx = true} : vector<2x16x1xf32> -> vector<2x16x1xf32>
    %102 = vector.broadcast %101 : vector<2x16x1xf32> to vector<2x16x8xf32>
    %103 = arith.mulf %100, %102 : vector<2x16x8xf32>
    %104 = vector.extract_strided_slice %103 {offsets = [0, 0, 0], sizes = [1, 8, 8], strides = [1, 1, 1]} : vector<2x16x8xf32> to vector<1x8x8xf32>
    %105 = vector.shape_cast %104 : vector<1x8x8xf32> to vector<8x8xf32>
    %106 = vector.extract_strided_slice %103 {offsets = [0, 8, 0], sizes = [1, 8, 8], strides = [1, 1, 1]} : vector<2x16x8xf32> to vector<1x8x8xf32>
    %107 = vector.shape_cast %106 : vector<1x8x8xf32> to vector<8x8xf32>
    %108 = vector.extract_strided_slice %103 {offsets = [1, 0, 0], sizes = [1, 8, 8], strides = [1, 1, 1]} : vector<2x16x8xf32> to vector<1x8x8xf32>
    %109 = vector.shape_cast %108 : vector<1x8x8xf32> to vector<8x8xf32>
    %110 = vector.extract_strided_slice %103 {offsets = [1, 8, 0], sizes = [1, 8, 8], strides = [1, 1, 1]} : vector<2x16x8xf32> to vector<1x8x8xf32>
    %111 = vector.shape_cast %110 : vector<1x8x8xf32> to vector<8x8xf32>
    %112 = tpu.concatenate %105, %107, %109, %111 in 1 : vector<8x8xf32>, vector<8x8xf32>, vector<8x8xf32>, vector<8x8xf32> -> vector<8x32xf32>
    %113 = tpu.iota {dimensions = array<i32: 0>} : vector<8x1xi32>
    %114 = vector.broadcast %1 : i32 to vector<8x1xi32>
    %115 = arith.cmpi slt, %113, %114 : vector<8x1xi32>
    %cst_24 = arith.constant 0.000000e+00 : f32
    %116 = vector.shape_cast %115 : vector<8x1xi1> to vector<8x1xi1>
    %117 = vector.broadcast %116 : vector<8x1xi1> to vector<8x32xi1>
    %118 = vector.broadcast %cst_24 : f32 to vector<8x32xf32>
    %119 = arith.select %117, %112, %118 : vector<8x32xi1>, vector<8x32xf32>
    %120 = arith.truncf %119 : vector<8x32xf32> to vector<8x32xbf16>
    %c0_25 = arith.constant 0 : index
    %c0_26 = arith.constant 0 : index
    %121 = vector.load %arg8[%c0_25, %c0_26] : memref<32x32xbf16, #tpu.memory_space<vmem>>, vector<32x32xbf16>
    %cst_27 = arith.constant dense<0.000000e+00> : vector<8x32xf32>
    %122 = tpu.matmul %120, %121, %cst_27 {dimension_numbers = #tpu.dot_dimension_numbers<[1], [0], [0], [1], [0, 0, 1, 1], [], []>} : vector<8x32xbf16>, vector<32x32xbf16>, vector<8x32xf32> -> vector<8x32xf32>
    %123 = arith.truncf %122 : vector<8x32xf32> to vector<8x32xbf16>
    %c0_28 = arith.constant 0 : index
    %c0_29 = arith.constant 0 : index
    %124 = vector.load %arg9[%c0_28, %c0_29] : memref<8x32xbf16, #tpu.memory_space<vmem>>, vector<8x32xbf16>
    tpu.vector_store %arg9[%c0_28, %c0_29], %123 {strides = array<i32>} : memref<8x32xbf16, #tpu.memory_space<vmem>>, vector<8x32xbf16>,
    return
  }
  func.func @transform_0(%arg0: i32, %arg1: memref<2xi32, #tpu.memory_space<smem>>) -> (i32, i32) {
    %c0_i32 = arith.constant 0 : i32
    %c0_i32_0 = arith.constant 0 : i32
    return %arg0, %c0_i32 : i32, i32
  }
  func.func @transform_1(%arg0: i32, %arg1: memref<2xi32, #tpu.memory_space<smem>>) -> (i32, i32) {
    %c0_i32 = arith.constant 0 : i32
    %c0_i32_0 = arith.constant 0 : i32
    return %arg0, %c0_i32 : i32, i32
  }
  func.func @transform_2(%arg0: i32, %arg1: memref<2xi32, #tpu.memory_space<smem>>) -> (i32, i32) {
    %c0_i32 = arith.constant 0 : i32
    %c0_i32_0 = arith.constant 0 : i32
    return %arg0, %c0_i32 : i32, i32
  }
  func.func @transform_3(%arg0: i32, %arg1: memref<2xi32, #tpu.memory_space<smem>>) -> (i32, i32) {
    %c0_i32 = arith.constant 0 : i32
    %c0_i32_0 = arith.constant 0 : i32
    %c0_i32_1 = arith.constant 0 : i32
    return %c0_i32, %c0_i32_0 : i32, i32
  }
  func.func @transform_4(%arg0: i32, %arg1: memref<2xi32, #tpu.memory_space<smem>>) -> (i32, i32) {
    %c0_i32 = arith.constant 0 : i32
    %c0_i32_0 = arith.constant 0 : i32
    %c0_i32_1 = arith.constant 0 : i32
    return %c0_i32, %c0_i32_0 : i32, i32
  }
  func.func @transform_5(%arg0: i32, %arg1: memref<2xi32, #tpu.memory_space<smem>>) -> (i32, i32) {
    %c0_i32 = arith.constant 0 : i32
    %c0_i32_0 = arith.constant 0 : i32
    %c0_i32_1 = arith.constant 0 : i32
    return %c0_i32, %c0_i32_0 : i32, i32
  }
  func.func @transform_6(%arg0: i32, %arg1: memref<2xi32, #tpu.memory_space<smem>>) -> (i32, i32) {
    %c0_i32 = arith.constant 0 : i32
    %c0_i32_0 = arith.constant 0 : i32
    %c0_i32_1 = arith.constant 0 : i32
    return %c0_i32, %c0_i32_0 : i32, i32
  }
  func.func @transform_7(%arg0: i32, %arg1: memref<2xi32, #tpu.memory_space<smem>>) -> (i32, i32) {
    %c0_i32 = arith.constant 0 : i32
    %c0_i32_0 = arith.constant 0 : i32
    return %arg0, %c0_i32 : i32, i32
  }
}

</mosaic_0001>

<llo_original>
// kernel: llama_attention.1
$region0: #{llama_attention.1}
  #allocation0 [shape = 'u32[]', space=smem, size = 0x4, offset = 0x4, fixed_abs, tag = 'smem constant byte address 0x4 - core index']
  #allocation1 [shape = 'u32[144,128]{1,0:T(1,128)}', space=vmem, size = 0x12000, scoped, tag = 'internal scratch']
  #allocation2 [shape = 's32[1]{0}', space=sflag, size = 0x4, scoped, tag = 'scoped memory for llama_attention.1']
  #allocation3 [shape = 'u8[512]{0}', space=smem, size = 0x200, scoped, tag = 'prefetched SMEM operand 0']
  %s0 = inlined_call_operand.vmem [shape: s32[2], index: 0, kind: input, shape index: {}]
  %s1 = inlined_call_operand.vmem [shape: bf16[16,32], index: 1, kind: input, shape index: {}]
  %s2 = inlined_call_operand.vmem [shape: f32[16,8], index: 2, kind: input, shape index: {}]
  %s3 = inlined_call_operand.vmem [shape: f32[16,8], index: 3, kind: input, shape index: {}]
  %s4 = inlined_call_operand.vmem [shape: bf16[32,32], index: 4, kind: input, shape index: {}]
  %s5 = inlined_call_operand.vmem [shape: bf16[32,16], index: 5, kind: input, shape index: {}]
  %s6 = inlined_call_operand.vmem [shape: bf16[32,16], index: 6, kind: input, shape index: {}]
  %s7 = inlined_call_operand.vmem [shape: bf16[32,32], index: 7, kind: input, shape index: {}]
  %s8 = inlined_call_operand.hbm [shape: bf16[16,32], index: 8, kind: output, shape index: {}]
  %s9 = sld [smem:[#allocation0]]
  $region61: #{llama_attention.1} parent=0
    _
  %s11 = ssub.s32 1, %s9
  %s12 = scalar_select 0, %s11, %s9
  %s13 = sshll.u32 %s0, 4
  %s14 = int_to_ptr.vmem [resolvable:$true] %s13
  %16 = dma.vmem_to_smem %s14, 16, [#allocation3], [#allocation2]
  %17 = dma.done [#allocation2], 16
  %18 = sfence
  $region1: #{llama_attention.1} parent=0
    #allocation4 [shape = 'u8[4096]{0}', space=vmem, size = 0x1000, scoped, tag = 'output window, operand 0']
    #allocation5 [shape = 's32[2]{0}', space=sflag, size = 0x8, scoped, tag = 'scoped memory for llama_attention.1']
    %19 = vsyncpa [#allocation5], 0
    %s20 = scalar_lea.sflag [#allocation5], 1
    %21 = vsyncpa %s20, 0
    loop: start=0, step=1, limit=4
    $region2: #{llama_attention.1} parent=1 // loop_pre_header
      _
    $region3: #{llama_attention.1} parent=1 // loop_header
      %s23 = sphi 0, %s27
      %p24 = scmp.ge.s32.totalorder %s23, 4
      %s33 = sphi 0, %s35
      %s36 = sphi 0, %s33
      %s37 = sphi 0, %s36
      %s53 = sphi 0, %s37
      %s59 = sphi 0, %s61
      %s62 = sphi 0, %s59
      %s63 = sphi 0, %s62
      %s79 = sphi 0, %s63
      %s85 = sphi 0, %s87
      %s88 = sphi 0, %s85
      %s89 = sphi 0, %s88
      %s105 = sphi 0, %s89
      %s109 = sphi 0, %s109
      %s111 = sphi 0, %s109
      %s112 = sphi 0, %s111
      %s126 = sphi 0, %s112
      %s130 = sphi 0, %s130
      %s132 = sphi 0, %s130
      %s133 = sphi 0, %s132
      %s147 = sphi 0, %s133
      %s151 = sphi 0, %s151
      %s153 = sphi 0, %s151
      %s154 = sphi 0, %s153
      %s168 = sphi 0, %s154
      %s172 = sphi 0, %s172
      %s174 = sphi 0, %s172
      %s175 = sphi 0, %s174
      %s189 = sphi 0, %s175
      %s195 = sphi 0, %s197
      %s198 = sphi 0, %s195
      %s199 = sphi 0, %s198
      %s215 = sphi 0, %s199
    $region4: #{llama_attention.1} parent=1 // loop_header_branch
      %26 = sbr.rel (%p24) target = $region8
    $region5: #{llama_attention.1} parent=1 // loop_body
      %s28 = ssub.s32 %s23, 1
      %s29 = ssub.s32 %s23, 2
      %s30 = sadd.s32 %s23, 1
      %s31 = ssub.s32 %s23, %s30
      %p32 = scmp.eq.s32.totalorder %s31, 0
      %s34 = sadd.s32 %s33, 1
      %s35 = scalar_select %p32, %s33, %s34
      %p38 = pneg %p32
      %p39 = scmp.eq.s32.totalorder %s23, 1
      %p40 = por %p38, %p39
      %p41 = scmp.ne.s32.totalorder %s33, %s36
      %p42 = scmp.eq.s32.totalorder %s23, 0
      %p43 = por %p41, %p42
      %p44 = scmp.ne.s32.totalorder %s33, %s36
      %p45 = scmp.eq.s32.totalorder %s28, 1
      %p46 = por %p44, %p45
      %p47 = scmp.ne.s32.totalorder %s36, %s37
      %p48 = scmp.eq.s32.totalorder %s28, 0
      %p49 = por %p47, %p48
      %p50 = scmp.ne.s32.totalorder %s36, %s37
      %p51 = scmp.eq.s32.totalorder %s29, 1
      %p52 = por %p50, %p51
      %p54 = scmp.ne.s32.totalorder %s37, %s53
      %p55 = scmp.eq.s32.totalorder %s29, 0
      %p56 = por %p54, %p55
      %s57 = ssub.s32 %s23, %s30
      %p58 = scmp.eq.s32.totalorder %s57, 0
      %s60 = sadd.s32 %s59, 1
      %s61 = scalar_select %p58, %s59, %s60
      %p64 = pneg %p58
      %p65 = scmp.eq.s32.totalorder %s23, 1
      %p66 = por %p64, %p65
      %p67 = scmp.ne.s32.totalorder %s59, %s62
      %p68 = scmp.eq.s32.totalorder %s23, 0
      %p69 = por %p67, %p68
      %p70 = scmp.ne.s32.totalorder %s59, %s62
      %p71 = scmp.eq.s32.totalorder %s28, 1
      %p72 = por %p70, %p71
      %p73 = scmp.ne.s32.totalorder %s62, %s63
      %p74 = scmp.eq.s32.totalorder %s28, 0
      %p75 = por %p73, %p74
      %p76 = scmp.ne.s32.totalorder %s62, %s63
      %p77 = scmp.eq.s32.totalorder %s29, 1
      %p78 = por %p76, %p77
      %p80 = scmp.ne.s32.totalorder %s63, %s79
      %p81 = scmp.eq.s32.totalorder %s29, 0
      %p82 = por %p80, %p81
      %s83 = ssub.s32 %s23, %s30
      %p84 = scmp.eq.s32.totalorder %s83, 0
      %s86 = sadd.s32 %s85, 1
      %s87 = scalar_select %p84, %s85, %s86
      %p90 = pneg %p84
      %p91 = scmp.eq.s32.totalorder %s23, 1
      %p92 = por %p90, %p91
      %p93 = scmp.ne.s32.totalorder %s85, %s88
      %p94 = scmp.eq.s32.totalorder %s23, 0
      %p95 = por %p93, %p94
      %p96 = scmp.ne.s32.totalorder %s85, %s88
      %p97 = scmp.eq.s32.totalorder %s28, 1
      %p98 = por %p96, %p97
      %p99 = scmp.ne.s32.totalorder %s88, %s89
      %p100 = scmp.eq.s32.totalorder %s28, 0
      %p101 = por %p99, %p100
      %p102 = scmp.ne.s32.totalorder %s88, %s89
      %p103 = scmp.eq.s32.totalorder %s29, 1
      %p104 = por %p102, %p103
      %p106 = scmp.ne.s32.totalorder %s89, %s105
      %p107 = scmp.eq.s32.totalorder %s29, 0
      %p108 = por %p106, %p107
      %s110 = sadd.s32 %s109, 1
      %p113 = scmp.eq.s32.totalorder %s23, 1
      %p114 = scmp.ne.s32.totalorder %s109, %s111
      %p115 = scmp.eq.s32.totalorder %s23, 0
      %p116 = por %p114, %p115
      %p117 = scmp.ne.s32.totalorder %s109, %s111
      %p118 = scmp.eq.s32.totalorder %s28, 1
      %p119 = por %p117, %p118
      %p120 = scmp.ne.s32.totalorder %s111, %s112
      %p121 = scmp.eq.s32.totalorder %s28, 0
      %p122 = por %p120, %p121
      %p123 = scmp.ne.s32.totalorder %s111, %s112
      %p124 = scmp.eq.s32.totalorder %s29, 1
      %p125 = por %p123, %p124
      %p127 = scmp.ne.s32.totalorder %s112, %s126
      %p128 = scmp.eq.s32.totalorder %s29, 0
      %p129 = por %p127, %p128
      %s131 = sadd.s32 %s130, 1
      %p134 = scmp.eq.s32.totalorder %s23, 1
      %p135 = scmp.ne.s32.totalorder %s130, %s132
      %p136 = scmp.eq.s32.totalorder %s23, 0
      %p137 = por %p135, %p136
      %p138 = scmp.ne.s32.totalorder %s130, %s132
      %p139 = scmp.eq.s32.totalorder %s28, 1
      %p140 = por %p138, %p139
      %p141 = scmp.ne.s32.totalorder %s132, %s133
      %p142 = scmp.eq.s32.totalorder %s28, 0
      %p143 = por %p141, %p142
      %p144 = scmp.ne.s32.totalorder %s132, %s133
      %p145 = scmp.eq.s32.totalorder %s29, 1
      %p146 = por %p144, %p145
      %p148 = scmp.ne.s32.totalorder %s133, %s147
      %p149 = scmp.eq.s32.totalorder %s29, 0
      %p150 = por %p148, %p149
      %s152 = sadd.s32 %s151, 1
      %p155 = scmp.eq.s32.totalorder %s23, 1
      %p156 = scmp.ne.s32.totalorder %s151, %s153
      %p157 = scmp.eq.s32.totalorder %s23, 0
      %p158 = por %p156, %p157
      %p159 = scmp.ne.s32.totalorder %s151, %s153
      %p160 = scmp.eq.s32.totalorder %s28, 1
      %p161 = por %p159, %p160
      %p162 = scmp.ne.s32.totalorder %s153, %s154
      %p163 = scmp.eq.s32.totalorder %s28, 0
      %p164 = por %p162, %p163
      %p165 = scmp.ne.s32.totalorder %s153, %s154
      %p166 = scmp.eq.s32.totalorder %s29, 1
      %p167 = por %p165, %p166
      %p169 = scmp.ne.s32.totalorder %s154, %s168
      %p170 = scmp.eq.s32.totalorder %s29, 0
      %p171 = por %p169, %p170
      %s173 = sadd.s32 %s172, 1
      %p176 = scmp.eq.s32.totalorder %s23, 1
      %p177 = scmp.ne.s32.totalorder %s172, %s174
      %p178 = scmp.eq.s32.totalorder %s23, 0
      %p179 = por %p177, %p178
      %p180 = scmp.ne.s32.totalorder %s172, %s174
      %p181 = scmp.eq.s32.totalorder %s28, 1
      %p182 = por %p180, %p181
      %p183 = scmp.ne.s32.totalorder %s174, %s175
      %p184 = scmp.eq.s32.totalorder %s28, 0
      %p185 = por %p183, %p184
      %p186 = scmp.ne.s32.totalorder %s174, %s175
      %p187 = scmp.eq.s32.totalorder %s29, 1
      %p188 = por %p186, %p187
      %p190 = scmp.ne.s32.totalorder %s175, %s189
      %p191 = scmp.eq.s32.totalorder %s29, 0
      %p192 = por %p190, %p191
      %s193 = ssub.s32 %s23, %s30
      %p194 = scmp.eq.s32.totalorder %s193, 0
      %s196 = sadd.s32 %s195, 1
      %s197 = scalar_select %p194, %s195, %s196
      %p200 = pneg %p194
      %p201 = scmp.eq.s32.totalorder %s23, 1
      %p202 = por %p200, %p201
      %p203 = scmp.ne.s32.totalorder %s195, %s198
      %p204 = scmp.eq.s32.totalorder %s23, 0
      %p205 = por %p203, %p204
      %p206 = scmp.ne.s32.totalorder %s195, %s198
      %p207 = scmp.eq.s32.totalorder %s28, 1
      %p208 = por %p206, %p207
      %p209 = scmp.ne.s32.totalorder %s198, %s199
      %p210 = scmp.eq.s32.totalorder %s28, 0
      %p211 = por %p209, %p210
      %p212 = scmp.ne.s32.totalorder %s198, %s199
      %p213 = scmp.eq.s32.totalorder %s29, 1
      %p214 = por %p212, %p213
      %p216 = scmp.ne.s32.totalorder %s199, %s215
      %p217 = scmp.eq.s32.totalorder %s29, 0
      %p218 = por %p216, %p217
      %p219 = scmp.le.s32.totalorder 1, %s23
      %p220 = scmp.lt.s32.totalorder %s23, 3
      %p221 = pnand %p219, %p220
      %p222 = pneg %p221
      // Predicated region
      $region9: #{llama_attention.1} parent=5 // pred_check
        _
      $region10: #{llama_attention.1} parent=5 // pred_check_branch
        %224 = sbr.rel (%p221) target = $region12
      $region11: #{llama_attention.1} parent=5 // pred_region
        %s225 = ssub.s32 %s23, 1
        // Predicated region
        $region13: #{llama_attention.1} parent=11 // pred_check
          %p226 = pneg %p122
        $region14: #{llama_attention.1} parent=11 // pred_check_branch
          %228 = sbr.rel (%p226) target = $region16
        $region15: #{llama_attention.1} parent=11 // pred_region
          _
        $region16: #{llama_attention.1} parent=11 // pred_fallthru
          _
        // Predicated region
        $region17: #{llama_attention.1} parent=11 // pred_check
          %p229 = pneg %p143
        $region18: #{llama_attention.1} parent=11 // pred_check_branch
          %231 = sbr.rel (%p229) target = $region20
        $region19: #{llama_attention.1} parent=11 // pred_region
          _
        $region20: #{llama_attention.1} parent=11 // pred_fallthru
          _
        // Predicated region
        $region21: #{llama_attention.1} parent=11 // pred_check
          %p232 = pneg %p164
        $region22: #{llama_attention.1} parent=11 // pred_check_branch
          %234 = sbr.rel (%p232) target = $region24
        $region23: #{llama_attention.1} parent=11 // pred_region
          _
        $region24: #{llama_attention.1} parent=11 // pred_fallthru
          _
        // Predicated region
        $region25: #{llama_attention.1} parent=11 // pred_check
          %p235 = pneg %p185
        $region26: #{llama_attention.1} parent=11 // pred_check_branch
          %237 = sbr.rel (%p235) target = $region28
        $region27: #{llama_attention.1} parent=11 // pred_region
          _
        $region28: #{llama_attention.1} parent=11 // pred_fallthru
          _
      $region12: #{llama_attention.1} parent=5 // pred_fallthru
        _
      %p238 = scmp.lt.s32.totalorder %s23, 2
      // Predicated region
      $region29: #{llama_attention.1} parent=5 // pred_check
        %p239 = pneg %p238
      $region30: #{llama_attention.1} parent=5 // pred_check_branch
        %241 = sbr.rel (%p239) target = $region32
      $region31: #{llama_attention.1} parent=5 // pred_region
        // Predicated region
        $region33: #{llama_attention.1} parent=31 // pred_check
          %p242 = pneg %p43
        $region34: #{llama_attention.1} parent=31 // pred_check_branch
          %244 = sbr.rel (%p242) target = $region36
        $region35: #{llama_attention.1} parent=31 // pred_region
          %p245 = scmp.lt.s32.totalorder %s23, 1
          %s246 = scalar_select %p245, %s23, 1
          %s247 = smul.addr %s246, 4
          %s248 = scalar_lea.vmem %s1, %s247
        $region36: #{llama_attention.1} parent=31 // pred_fallthru
          _
        // Predicated region
        $region37: #{llama_attention.1} parent=31 // pred_check
          %p249 = pneg %p69
        $region38: #{llama_attention.1} parent=31 // pred_check_branch
          %251 = sbr.rel (%p249) target = $region40
        $region39: #{llama_attention.1} parent=31 // pred_region
          %p252 = scmp.lt.s32.totalorder %s23, 1
          %s253 = scalar_select %p252, %s23, 1
          %s254 = smul.addr %s253, 8
          %s255 = scalar_lea.vmem %s2, %s254
        $region40: #{llama_attention.1} parent=31 // pred_fallthru
          _
        // Predicated region
        $region41: #{llama_attention.1} parent=31 // pred_check
          %p256 = pneg %p95
        $region42: #{llama_attention.1} parent=31 // pred_check_branch
          %258 = sbr.rel (%p256) target = $region44
        $region43: #{llama_attention.1} parent=31 // pred_region
          %p259 = scmp.lt.s32.totalorder %s23, 1
          %s260 = scalar_select %p259, %s23, 1
          %s261 = smul.addr %s260, 8
          %s262 = scalar_lea.vmem %s3, %s261
        $region44: #{llama_attention.1} parent=31 // pred_fallthru
          _
      $region32: #{llama_attention.1} parent=5 // pred_fallthru
        _
      %p263 = scmp.le.s32.totalorder 1, %s23
      %p264 = scmp.lt.s32.totalorder %s23, 3
      %p265 = pnand %p263, %p264
      %p266 = pneg %p265
      // Predicated region
      $region45: #{llama_attention.1} parent=5 // pred_check
        _
      $region46: #{llama_attention.1} parent=5 // pred_check_branch
        %268 = sbr.rel (%p265) target = $region48
      $region47: #{llama_attention.1} parent=5 // pred_region
        %s269 = ssub.s32 %s23, 1
        %p270 = scmp.lt.s32.totalorder %s28, 1
        %s271 = scalar_select %p270, %s28, 1
        %s272 = smul.addr %s271, 4
        %s273 = scalar_lea.vmem %s1, %s272
        %p274 = pneg %p49
        %p275 = pneg %p46
        %p276 = scmp.lt.s32.totalorder %s28, 1
        %s277 = scalar_select %p276, %s28, 1
        %s278 = smul.addr %s277, 8
        %s279 = scalar_lea.vmem %s2, %s278
        %p280 = pneg %p75
        %p281 = pneg %p72
        %p282 = scmp.lt.s32.totalorder %s28, 1
        %s283 = scalar_select %p282, %s28, 1
        %s284 = smul.addr %s283, 8
        %s285 = scalar_lea.vmem %s3, %s284
        %p286 = pneg %p101
        %p287 = pneg %p98
        %p288 = pneg %p122
        %p289 = pneg %p119
        %p290 = pneg %p143
        %p291 = pneg %p140
        %p292 = pneg %p164
        %p293 = pneg %p161
        %p294 = pneg %p185
        %p295 = pneg %p182
        %p296 = pneg %p211
        %p297 = pneg %p208
        %s298 = sand.u32 %s198, 1
        %s299 = scalar_lea.sflag [#allocation5], %s298
        %s300 = sand.u32 %s198, 1
        %s301 = smul.addr %s300, 4
        %s302 = scalar_lea.vmem [#allocation4], %s301
        %p303 = scmp.lt.s32.totalorder %s28, 1
        %s304 = scalar_select %p303, %s28, 1
        %s305 = smul.addr %s304, 4
        %s306 = scalar_lea.vmem %s1, %s305
        %p307 = scmp.lt.s32.totalorder %s28, 1
        %s308 = scalar_select %p307, %s28, 1
        %s309 = smul.addr %s308, 8
        %s310 = scalar_lea.vmem %s2, %s309
        %p311 = scmp.lt.s32.totalorder %s28, 1
        %s312 = scalar_select %p311, %s28, 1
        %s313 = smul.addr %s312, 8
        %s314 = scalar_lea.vmem %s3, %s313
        %s316 = sld [smem:[#allocation3 + %s28]]
        %v317 = vld [vmem:[%s306] sm:$0xf]
        %v318 = vld [vmem:[%s4] sm:$0xf]
        %v319 = vld [vmem:[%s4 + $0x4] sm:$0xf]
        %v320 = vld [vmem:[%s4 + $0x8] sm:$0xf]
        %v321 = vld [vmem:[%s4 + $0xc] sm:$0xf]
        %v326 = vunpack.c.l.b16 %v318
        %v327 = vunpack.c.l.b16 %v319
        %v328 = vunpack.c.l.b16 %v320
        %v329 = vunpack.c.l.b16 %v321
        %v330 = vpack.c.b16 %v327, %v326
        %v331 = vpack.c.b16 %v329, %v328
        %vm334 = vcmask 261120
        %v336 = vsel %vm334, %v317, 0
        %338 = vmatprep.subr.bf16.mxu0 0
        %339 = vmatpush1.bf16.msra.mxu0 0
        %340 = vmatprep.subr.bf16.mxu0 0
        %341 = vmatpush1.bf16.msra.mxu0 0
        %342 = vmatprep.subr.bf16.mxu0 0
        %343 = vmatpush1.bf16.msra.mxu0 0
        %344 = vmatprep.subr.bf16.mxu0 0
        %345 = vmatpush1.bf16.msra.mxu0 0
        %346 = vmatprep.subr.bf16.mxu0 0
        %347 = vmatpush1.bf16.msra.mxu0 0
        %348 = vmatprep.subr.bf16.mxu0 0
        %349 = vmatpush1.bf16.msra.mxu0 0
        %350 = vmatprep.subr.bf16.mxu0 0
        %351 = vmatpush1.bf16.msra.mxu0 %v331
        %352 = vmatprep.subr.bf16.mxu0 0
        %353 = vmatpush1.bf16.msra.mxu0 %v330
        %354 = vmatprep.subr.bf16.mxu0 0
        %355 = vmatpush2.bf16.msra.mxu0 0
        %356 = vmatprep.subr.bf16.mxu0 0
        %357 = vmatpush2.bf16.msra.mxu0 0
        %358 = vmatprep.subr.bf16.mxu0 0
        %359 = vmatpush2.bf16.msra.mxu0 0
        %360 = vmatprep.subr.bf16.mxu0 0
        %361 = vmatpush2.bf16.msra.mxu0 0
        %362 = vmatprep.subr.bf16.mxu0 0
        %363 = vmatpush2.bf16.msra.mxu0 0
        %364 = vmatprep.subr.bf16.mxu0 0
        %365 = vmatpush2.bf16.msra.mxu0 0
        %366 = vmatprep.subr.bf16.mxu0 0
        %367 = vmatpush2.bf16.msra.mxu0 0
        %368 = vmatprep.subr.bf16.mxu0 0
        %369 = vmatpush2.bf16.msra.mxu0 0
        %370 = vmatprep.mubr.bf16.mxu0 0
        %371 = vmatmul.mubr.bf16.gmra.mxu0 %v336
        %v372 = vpop.f32.mrf.mxu0
        %v373 = vadd.f32 0.0, %v372
        %v374 = vpop.f32.mrf.mxu0
        %v375 = vpop.f32.mrf.mxu0
        %v376 = vpop.f32.mrf.mxu0
        %377 = vdwg.mxu0
        %v378 = vld [vmem:[%s5] sm:$0xf]
        %v379 = vld [vmem:[%s5 + $0x4] sm:$0xf]
        %v380 = vld [vmem:[%s5 + $0x8] sm:$0xf]
        %v381 = vld [vmem:[%s5 + $0xc] sm:$0xf]
        %v386 = vunpack.c.l.b16 %v378
        %v387 = vunpack.c.l.b16 %v379
        %v388 = vunpack.c.l.b16 %v380
        %v389 = vunpack.c.l.b16 %v381
        %v390 = vpack.c.b16 %v387, %v386
        %v391 = vpack.c.b16 %v389, %v388
        %394 = vmatprep.subr.bf16.mxu0 0
        %395 = vmatpush1.bf16.msra.mxu0 0
        %396 = vmatprep.subr.bf16.mxu0 0
        %397 = vmatpush1.bf16.msra.mxu0 0
        %398 = vmatprep.subr.bf16.mxu0 0
        %399 = vmatpush1.bf16.msra.mxu0 0
        %400 = vmatprep.subr.bf16.mxu0 0
        %401 = vmatpush1.bf16.msra.mxu0 0
        %402 = vmatprep.subr.bf16.mxu0 0
        %403 = vmatpush1.bf16.msra.mxu0 0
        %404 = vmatprep.subr.bf16.mxu0 0
        %405 = vmatpush1.bf16.msra.mxu0 0
        %406 = vmatprep.subr.bf16.mxu0 0
        %407 = vmatpush1.bf16.msra.mxu0 %v391
        %408 = vmatprep.subr.bf16.mxu0 0
        %409 = vmatpush1.bf16.msra.mxu0 %v390
        %410 = vmatprep.subr.bf16.mxu0 0
        %411 = vmatpush2.bf16.msra.mxu0 0
        %412 = vmatprep.subr.bf16.mxu0 0
        %413 = vmatpush2.bf16.msra.mxu0 0
        %414 = vmatprep.subr.bf16.mxu0 0
        %415 = vmatpush2.bf16.msra.mxu0 0
        %416 = vmatprep.subr.bf16.mxu0 0
        %417 = vmatpush2.bf16.msra.mxu0 0
        %418 = vmatprep.subr.bf16.mxu0 0
        %419 = vmatpush2.bf16.msra.mxu0 0
        %420 = vmatprep.subr.bf16.mxu0 0
        %421 = vmatpush2.bf16.msra.mxu0 0
        %422 = vmatprep.subr.bf16.mxu0 0
        %423 = vmatpush2.bf16.msra.mxu0 0
        %424 = vmatprep.subr.bf16.mxu0 0
        %425 = vmatpush2.bf16.msra.mxu0 0
        %426 = vmatprep.mubr.bf16.mxu0 0
        %427 = vmatmul.mubr.bf16.gmra.mxu0 %v336
        %v428 = vpop.f32.mrf.mxu0
        %v429 = vadd.f32 0.0, %v428
        %v430 = vpop.f32.mrf.mxu0
        %v431 = vpop.f32.mrf.mxu0
        %v432 = vpop.f32.mrf.mxu0
        %433 = vdwg.mxu0
        %v434 = vld [vmem:[%s6] sm:$0xf]
        %v435 = vld [vmem:[%s6 + $0x4] sm:$0xf]
        %v436 = vld [vmem:[%s6 + $0x8] sm:$0xf]
        %v437 = vld [vmem:[%s6 + $0xc] sm:$0xf]
        %v442 = vunpack.c.l.b16 %v434
        %v443 = vunpack.c.l.b16 %v435
        %v444 = vunpack.c.l.b16 %v436
        %v445 = vunpack.c.l.b16 %v437
        %v446 = vpack.c.b16 %v443, %v442
        %v447 = vpack.c.b16 %v445, %v444
        %450 = vmatprep.subr.bf16.mxu0 0
        %451 = vmatpush1.bf16.msra.mxu0 0
        %452 = vmatprep.subr.bf16.mxu0 0
        %453 = vmatpush1.bf16.msra.mxu0 0
        %454 = vmatprep.subr.bf16.mxu0 0
        %455 = vmatpush1.bf16.msra.mxu0 0
        %456 = vmatprep.subr.bf16.mxu0 0
        %457 = vmatpush1.bf16.msra.mxu0 0
        %458 = vmatprep.subr.bf16.mxu0 0
        %459 = vmatpush1.bf16.msra.mxu0 0
        %460 = vmatprep.subr.bf16.mxu0 0
        %461 = vmatpush1.bf16.msra.mxu0 0
        %462 = vmatprep.subr.bf16.mxu0 0
        %463 = vmatpush1.bf16.msra.mxu0 %v447
        %464 = vmatprep.subr.bf16.mxu0 0
        %465 = vmatpush1.bf16.msra.mxu0 %v446
        %466 = vmatprep.subr.bf16.mxu0 0
        %467 = vmatpush2.bf16.msra.mxu0 0
        %468 = vmatprep.subr.bf16.mxu0 0
        %469 = vmatpush2.bf16.msra.mxu0 0
        %470 = vmatprep.subr.bf16.mxu0 0
        %471 = vmatpush2.bf16.msra.mxu0 0
        %472 = vmatprep.subr.bf16.mxu0 0
        %473 = vmatpush2.bf16.msra.mxu0 0
        %474 = vmatprep.subr.bf16.mxu0 0
        %475 = vmatpush2.bf16.msra.mxu0 0
        %476 = vmatprep.subr.bf16.mxu0 0
        %477 = vmatpush2.bf16.msra.mxu0 0
        %478 = vmatprep.subr.bf16.mxu0 0
        %479 = vmatpush2.bf16.msra.mxu0 0
        %480 = vmatprep.subr.bf16.mxu0 0
        %481 = vmatpush2.bf16.msra.mxu0 0
        %482 = vmatprep.mubr.bf16.mxu0 0
        %483 = vmatmul.mubr.bf16.gmra.mxu0 %v336
        %v484 = vpop.f32.mrf.mxu0
        %v485 = vadd.f32 0.0, %v484
        %v486 = vpop.f32.mrf.mxu0
        %v487 = vpop.f32.mrf.mxu0
        %v488 = vpop.f32.mrf.mxu0
        %489 = vdwg.mxu0
        %491 = vrot.lane.b32.xlu0 %v373, 120
        %v492 = vpop.permute.xlu0 %491
        %494 = vrot.lane.b32.xlu0 %v373, 112
        %v495 = vpop.permute.xlu0 %494
        %496 = vrot.lane.b32.xlu0 %v492, 112
        %v497 = vpop.permute.xlu0 %496
        %501 = vrot.lane.b32.xlu0 %v429, 120
        %v502 = vpop.permute.xlu0 %501
        %505 = vrot.lane.b32.xlu0 %v485, 120
        %v506 = vpop.permute.xlu0 %505
        %v508 = vld [vmem:[%s310] sm:$0xff]
        %v509 = vld [vmem:[%s314] sm:$0xff]
        %v510 = vmul.f32 %v373, %v508
        %v511 = vmul.f32 %v492, %v508
        %v512 = vmul.f32 %v495, %v508
        %v513 = vmul.f32 %v497, %v508
        %v514 = vsub.f32 0.0, %v373
        %v515 = vsub.f32 0.0, %v492
        %v516 = vsub.f32 0.0, %v495
        %v517 = vsub.f32 0.0, %v497
        %522 = vrot.lane.b32.xlu0 %v514, 124
        %v523 = vpop.permute.xlu0 %522
        %524 = vrot.lane.b32.xlu0 %v515, 124
        %v525 = vpop.permute.xlu0 %524
        %526 = vrot.lane.b32.xlu0 %v516, 124
        %v527 = vpop.permute.xlu0 %526
        %528 = vrot.lane.b32.xlu0 %v517, 124
        %v529 = vpop.permute.xlu0 %528
        %534 = vrot.lane.b32.xlu0 %v373, 4
        %v535 = vpop.permute.xlu0 %534
        %536 = vrot.lane.b32.xlu0 %v492, 4
        %v537 = vpop.permute.xlu0 %536
        %538 = vrot.lane.b32.xlu0 %v495, 4
        %v539 = vpop.permute.xlu0 %538
        %540 = vrot.lane.b32.xlu0 %v497, 4
        %v541 = vpop.permute.xlu0 %540
        %vm546 = vcmask 31744
        %v547 = vsel %vm546, %v523, %v535
        %v548 = vsel %vm546, %v525, %v537
        %v549 = vsel %vm546, %v527, %v539
        %v550 = vsel %vm546, %v529, %v541
        %v551 = vmul.f32 %v547, %v509
        %v552 = vmul.f32 %v548, %v509
        %v553 = vmul.f32 %v549, %v509
        %v554 = vmul.f32 %v550, %v509
        %v555 = vadd.f32 %v510, %v551
        %v556 = vadd.f32 %v511, %v552
        %v557 = vadd.f32 %v512, %v553
        %v558 = vadd.f32 %v513, %v554
        %v559 = vmul.f32 %v429, %v508
        %v560 = vmul.f32 %v502, %v508
        %v561 = vsub.f32 0.0, %v429
        %v562 = vsub.f32 0.0, %v502
        %565 = vrot.lane.b32.xlu0 %v561, 124
        %v566 = vpop.permute.xlu0 %565
        %567 = vrot.lane.b32.xlu0 %v562, 124
        %v568 = vpop.permute.xlu0 %567
        %571 = vrot.lane.b32.xlu0 %v429, 4
        %v572 = vpop.permute.xlu0 %571
        %573 = vrot.lane.b32.xlu0 %v502, 4
        %v574 = vpop.permute.xlu0 %573
        %v577 = vsel %vm546, %v566, %v572
        %v578 = vsel %vm546, %v568, %v574
        %v579 = vmul.f32 %v577, %v509
        %v580 = vmul.f32 %v578, %v509
        %v581 = vadd.f32 %v559, %v579
        %v582 = vadd.f32 %v560, %v580
        %v583 = vmul.f32 %v555, 0.35355338
        %v584 = vmul.f32 %v556, 0.35355338
        %v585 = vmul.f32 %v557, 0.35355338
        %v586 = vmul.f32 %v558, 0.35355338
        %v587 = vpack.c.bf16 %v584, %v583
        %v588 = vpack.c.bf16 %v586, %v585
        %v589 = vpack.c.bf16 %v581, %v581
        %v590 = vpack.c.bf16 %v582, %v582
        %v591 = vpack.c.bf16 %v485, %v485
        %v592 = vpack.c.bf16 %v506, %v506
        %v593 = vlaneseq
        %v594 = vshrl.u32 %v593, 7
        %v595 = vadd.s32 %v594, 8
        %vm596 = vcmp.lt.s32.totalorder %v594, 0
        %v597 = vsub.s32 0, %v594
        %v598 = vsel %vm596, %v597, %v594
        %v599 = vshrl.u32 %v598, 3
        %v600 = vand.u32 %v598, 7
        %v601 = vsub.s32 0, %v600
        %v602 = vsel %vm596, %v601, %v600
        %vm603 = vcmp.lt.s32.totalorder %v595, 0
        %v604 = vsub.s32 0, %v595
        %v605 = vsel %vm603, %v604, %v595
        %v606 = vshrl.u32 %v605, 3
        %v607 = vand.u32 %v605, 7
        %v608 = vsub.s32 0, %v607
        %v609 = vsel %vm603, %v608, %v607
        %vm610 = vcmp.ne.s32.totalorder %v602, 0
        %vm611 = vcmp.ne.s32.totalorder %v609, 0
        %vm612 = vcmp.lt.s32.totalorder %v602, 0
        %vm613 = vcmp.lt.s32.totalorder %v609, 0
        %vm614 = vmand %vm612, %vm610
        %vm615 = vmand %vm613, %vm611
        %v616 = vadd.s32 %v602, 8
        %v617 = vadd.s32 %v609, 8
        %v618 = vsel %vm614, %v616, %v602
        %v619 = vsel %vm615, %v617, %v609
        %v620 = vlaneseq
        %v621 = vand.u32 %v620, 127
        %vm622 = vcmp.ge.s32.totalorder %v618, %v621
        %vm623 = vcmp.ge.s32.totalorder %v619, %v621
        %v624 = vstv %s316
        %vm625 = vcmp.lt.s32.totalorder %v621, %v624
        %v626 = vsel %vm625, 1, 0
        %vm627 = vcmp.eq.s32.totalorder %v626, 1
        %vm628 = vmand %vm622, %vm627
        %vm629 = vmand %vm623, %vm627
        %vm630 = vcmask 64512
        %v632 = vsel %vm630, %v587, 0
        %v635 = vsel %vm630, %v589, 0
        %637 = vmatprep.subr.bf16.mxu0 0
        %638 = vmatpush1.bf16.xpose.msra.mxu0 0
        %639 = vmatprep.subr.bf16.mxu0 0
        %640 = vmatpush1.bf16.xpose.msra.mxu0 0
        %641 = vmatprep.subr.bf16.mxu0 0
        %642 = vmatpush1.bf16.xpose.msra.mxu0 0
        %643 = vmatprep.subr.bf16.mxu0 0
        %644 = vmatpush1.bf16.xpose.msra.mxu0 0
        %645 = vmatprep.subr.bf16.mxu0 0
        %646 = vmatpush1.bf16.xpose.msra.mxu0 0
        %647 = vmatprep.subr.bf16.mxu0 0
        %648 = vmatpush1.bf16.xpose.msra.mxu0 0
        %649 = vmatprep.subr.bf16.mxu0 0
        %650 = vmatpush1.bf16.xpose.msra.mxu0 0
        %651 = vmatprep.subr.bf16.mxu0 0
        %652 = vmatpush1.bf16.xpose.msra.mxu0 %v635
        %653 = vmatprep.subr.bf16.mxu0 0
        %654 = vmatpush2.bf16.xpose.msra.mxu0 0
        %655 = vmatprep.subr.bf16.mxu0 0
        %656 = vmatpush2.bf16.xpose.msra.mxu0 0
        %657 = vmatprep.subr.bf16.mxu0 0
        %658 = vmatpush2.bf16.xpose.msra.mxu0 0
        %659 = vmatprep.subr.bf16.mxu0 0
        %660 = vmatpush2.bf16.xpose.msra.mxu0 0
        %661 = vmatprep.subr.bf16.mxu0 0
        %662 = vmatpush2.bf16.xpose.msra.mxu0 0
        %663 = vmatprep.subr.bf16.mxu0 0
        %664 = vmatpush2.bf16.xpose.msra.mxu0 0
        %665 = vmatprep.subr.bf16.mxu0 0
        %666 = vmatpush2.bf16.xpose.msra.mxu0 0
        %667 = vmatprep.subr.bf16.mxu0 0
        %668 = vmatpush2.bf16.xpose.msra.mxu0 0
        %669 = vmatprep.mubr.bf16.mxu0 0
        %670 = vmatmul.mubr.bf16.gmra.mxu0 %v632
        %v671 = vpop.f32.mrf.mxu0
        %v672 = vadd.f32 0.0, %v671
        %v673 = vpop.f32.mrf.mxu0
        %v674 = vpop.f32.mrf.mxu0
        %v675 = vadd.f32 0.0, %v674
        %v676 = vpop.f32.mrf.mxu0
        %677 = vdwg.mxu0
        %v679 = vsel %vm630, %v588, 0
        %v682 = vsel %vm630, %v590, 0
        %684 = vmatprep.subr.bf16.mxu0 0
        %685 = vmatpush1.bf16.xpose.msra.mxu0 0
        %686 = vmatprep.subr.bf16.mxu0 0
        %687 = vmatpush1.bf16.xpose.msra.mxu0 0
        %688 = vmatprep.subr.bf16.mxu0 0
        %689 = vmatpush1.bf16.xpose.msra.mxu0 0
        %690 = vmatprep.subr.bf16.mxu0 0
        %691 = vmatpush1.bf16.xpose.msra.mxu0 0
        %692 = vmatprep.subr.bf16.mxu0 0
        %693 = vmatpush1.bf16.xpose.msra.mxu0 0
        %694 = vmatprep.subr.bf16.mxu0 0
        %695 = vmatpush1.bf16.xpose.msra.mxu0 0
        %696 = vmatprep.subr.bf16.mxu0 0
        %697 = vmatpush1.bf16.xpose.msra.mxu0 0
        %698 = vmatprep.subr.bf16.mxu0 0
        %699 = vmatpush1.bf16.xpose.msra.mxu0 %v682
        %700 = vmatprep.subr.bf16.mxu0 0
        %701 = vmatpush2.bf16.xpose.msra.mxu0 0
        %702 = vmatprep.subr.bf16.mxu0 0
        %703 = vmatpush2.bf16.xpose.msra.mxu0 0
        %704 = vmatprep.subr.bf16.mxu0 0
        %705 = vmatpush2.bf16.xpose.msra.mxu0 0
        %706 = vmatprep.subr.bf16.mxu0 0
        %707 = vmatpush2.bf16.xpose.msra.mxu0 0
        %708 = vmatprep.subr.bf16.mxu0 0
        %709 = vmatpush2.bf16.xpose.msra.mxu0 0
        %710 = vmatprep.subr.bf16.mxu0 0
        %711 = vmatpush2.bf16.xpose.msra.mxu0 0
        %712 = vmatprep.subr.bf16.mxu0 0
        %713 = vmatpush2.bf16.xpose.msra.mxu0 0
        %714 = vmatprep.subr.bf16.mxu0 0
        %715 = vmatpush2.bf16.xpose.msra.mxu0 0
        %716 = vmatprep.mubr.bf16.mxu0 0
        %717 = vmatmul.mubr.bf16.gmra.mxu0 %v679
        %v718 = vpop.f32.mrf.mxu0
        %v719 = vadd.f32 0.0, %v718
        %v720 = vpop.f32.mrf.mxu0
        %v721 = vpop.f32.mrf.mxu0
        %v722 = vadd.f32 0.0, %v721
        %v723 = vpop.f32.mrf.mxu0
        %724 = vdwg.mxu0
        %v725 = vsel %vm628, 1, 0
        %v726 = vsel %vm629, 1, 0
        %vm727 = vcmp.eq.s32.totalorder %v725, 1
        %vm728 = vcmp.eq.s32.totalorder %v726, 1
        %v729 = vsel %vm727, %v672, -1e+30
        %v730 = vsel %vm728, %v675, -1e+30
        %v731 = vsel %vm727, %v719, -1e+30
        %v732 = vsel %vm728, %v722, -1e+30
        %v733 = vsel %vm630, %v729, -inf
        %734 = vmax.xlane.f32.xlu0 %v733
        %v735 = vpop.xlane.xlu0 %734
        %v736 = vsel %vm630, %v730, -inf
        %737 = vmax.xlane.f32.xlu0 %v736
        %v738 = vpop.xlane.xlu0 %737
        %v739 = vsel %vm630, %v731, -inf
        %740 = vmax.xlane.f32.xlu0 %v739
        %v741 = vpop.xlane.xlu0 %740
        %v742 = vsel %vm630, %v732, -inf
        %743 = vmax.xlane.f32.xlu0 %v742
        %v744 = vpop.xlane.xlu0 %743
        %v745 = vsub.f32 %v729, %v735
        %v746 = vsub.f32 %v730, %v738
        %v747 = vsub.f32 %v731, %v741
        %v748 = vsub.f32 %v732, %v744
        %v749 = vmul.f32 %v745, 1.442695
        %v750 = vpow.pop %v749
        %v751 = vmul.f32 %v746, 1.442695
        %v752 = vpow.pop %v751
        %v753 = vmul.f32 %v747, 1.442695
        %v754 = vpow.pop %v753
        %v755 = vmul.f32 %v748, 1.442695
        %v756 = vpow.pop %v755
        %v757 = vsel %vm630, %v750, 0.0
        %758 = vadd.xlane.f32.xlu0 %v757
        %v759 = vpop.xlane.xlu0 %758
        %v760 = vsel %vm630, %v752, 0.0
        %761 = vadd.xlane.f32.xlu0 %v760
        %v762 = vpop.xlane.xlu0 %761
        %v763 = vsel %vm630, %v754, 0.0
        %764 = vadd.xlane.f32.xlu0 %v763
        %v765 = vpop.xlane.xlu0 %764
        %v766 = vsel %vm630, %v756, 0.0
        %767 = vadd.xlane.f32.xlu0 %v766
        %v768 = vpop.xlane.xlu0 %767
        %v769 = vpack.c.bf16 %v752, %v750
        %v770 = vpack.c.bf16 %v756, %v754
        %v772 = vsel %vm630, %v769, 0
        %vm774 = vcmask 1043456
        %v776 = vsel %vm774, %v591, 0
        %778 = vmatprep.subr.bf16.mxu0 0
        %779 = vmatpush1.bf16.msra.mxu0 0
        %780 = vmatprep.subr.bf16.mxu0 0
        %781 = vmatpush1.bf16.msra.mxu0 0
        %782 = vmatprep.subr.bf16.mxu0 0
        %783 = vmatpush1.bf16.msra.mxu0 0
        %784 = vmatprep.subr.bf16.mxu0 0
        %785 = vmatpush1.bf16.msra.mxu0 0
        %786 = vmatprep.subr.bf16.mxu0 0
        %787 = vmatpush1.bf16.msra.mxu0 0
        %788 = vmatprep.subr.bf16.mxu0 0
        %789 = vmatpush1.bf16.msra.mxu0 0
        %790 = vmatprep.subr.bf16.mxu0 0
        %791 = vmatpush1.bf16.msra.mxu0 0
        %792 = vmatprep.subr.bf16.mxu0 0
        %793 = vmatpush1.bf16.msra.mxu0 %v776
        %794 = vmatprep.subr.bf16.mxu0 0
        %795 = vmatpush2.bf16.msra.mxu0 0
        %796 = vmatprep.subr.bf16.mxu0 0
        %797 = vmatpush2.bf16.msra.mxu0 0
        %798 = vmatprep.subr.bf16.mxu0 0
        %799 = vmatpush2.bf16.msra.mxu0 0
        %800 = vmatprep.subr.bf16.mxu0 0
        %801 = vmatpush2.bf16.msra.mxu0 0
        %802 = vmatprep.subr.bf16.mxu0 0
        %803 = vmatpush2.bf16.msra.mxu0 0
        %804 = vmatprep.subr.bf16.mxu0 0
        %805 = vmatpush2.bf16.msra.mxu0 0
        %806 = vmatprep.subr.bf16.mxu0 0
        %807 = vmatpush2.bf16.msra.mxu0 0
        %808 = vmatprep.subr.bf16.mxu0 0
        %809 = vmatpush2.bf16.msra.mxu0 0
        %810 = vmatprep.mubr.bf16.mxu0 0
        %811 = vmatmul.mubr.bf16.gmra.mxu0 %v772
        %v812 = vpop.f32.mrf.mxu0
        %v813 = vadd.f32 0.0, %v812
        %v814 = vpop.f32.mrf.mxu0
        %v815 = vpop.f32.mrf.mxu0
        %v816 = vadd.f32 0.0, %v815
        %v817 = vpop.f32.mrf.mxu0
        %818 = vdwg.mxu0
        %v820 = vsel %vm630, %v770, 0
        %v823 = vsel %vm774, %v592, 0
        %825 = vmatprep.subr.bf16.mxu0 0
        %826 = vmatpush1.bf16.msra.mxu0 0
        %827 = vmatprep.subr.bf16.mxu0 0
        %828 = vmatpush1.bf16.msra.mxu0 0
        %829 = vmatprep.subr.bf16.mxu0 0
        %830 = vmatpush1.bf16.msra.mxu0 0
        %831 = vmatprep.subr.bf16.mxu0 0
        %832 = vmatpush1.bf16.msra.mxu0 0
        %833 = vmatprep.subr.bf16.mxu0 0
        %834 = vmatpush1.bf16.msra.mxu0 0
        %835 = vmatprep.subr.bf16.mxu0 0
        %836 = vmatpush1.bf16.msra.mxu0 0
        %837 = vmatprep.subr.bf16.mxu0 0
        %838 = vmatpush1.bf16.msra.mxu0 0
        %839 = vmatprep.subr.bf16.mxu0 0
        %840 = vmatpush1.bf16.msra.mxu0 %v823
        %841 = vmatprep.subr.bf16.mxu0 0
        %842 = vmatpush2.bf16.msra.mxu0 0
        %843 = vmatprep.subr.bf16.mxu0 0
        %844 = vmatpush2.bf16.msra.mxu0 0
        %845 = vmatprep.subr.bf16.mxu0 0
        %846 = vmatpush2.bf16.msra.mxu0 0
        %847 = vmatprep.subr.bf16.mxu0 0
        %848 = vmatpush2.bf16.msra.mxu0 0
        %849 = vmatprep.subr.bf16.mxu0 0
        %850 = vmatpush2.bf16.msra.mxu0 0
        %851 = vmatprep.subr.bf16.mxu0 0
        %852 = vmatpush2.bf16.msra.mxu0 0
        %853 = vmatprep.subr.bf16.mxu0 0
        %854 = vmatpush2.bf16.msra.mxu0 0
        %855 = vmatprep.subr.bf16.mxu0 0
        %856 = vmatpush2.bf16.msra.mxu0 0
        %857 = vmatprep.mubr.bf16.mxu0 0
        %858 = vmatmul.mubr.bf16.gmra.mxu0 %v820
        %v859 = vpop.f32.mrf.mxu0
        %v860 = vadd.f32 0.0, %v859
        %v861 = vpop.f32.mrf.mxu0
        %v862 = vpop.f32.mrf.mxu0
        %v863 = vadd.f32 0.0, %v862
        %v864 = vpop.f32.mrf.mxu0
        %865 = vdwg.mxu0
        %v866 = vrcp.pop %v759
        %v867 = vrcp.pop %v762
        %v868 = vrcp.pop %v765
        %v869 = vrcp.pop %v768
        %v870 = vmul.f32 %v813, %v866
        %v871 = vmul.f32 %v816, %v867
        %v872 = vmul.f32 %v860, %v868
        %v873 = vmul.f32 %v863, %v869
        %875 = vrot.lane.b32.xlu0 %v871, 8
        %v876 = vpop.permute.xlu0 %875
        %879 = vrot.lane.b32.xlu0 %v872, 16
        %v880 = vpop.permute.xlu0 %879
        %883 = vrot.lane.b32.xlu0 %v873, 24
        %v884 = vpop.permute.xlu0 %883
        %v886 = vsel %vm630, %v870, %v876
        %vm887 = vcmask 130048
        %v888 = vsel %vm887, %v886, %v880
        %vm889 = vcmask 195584
        %v890 = vsel %vm889, %v888, %v884
        %vm891 = vcmp.lt.s32.totalorder %v594, %v624
        %v892 = vsel %vm891, 1, 0
        %vm893 = vcmp.eq.s32.totalorder %v892, 1
        %v894 = vsel %vm893, %v890, 0.0
        %v895 = vpack.c.bf16 %v894, %v894
        %v896 = vld [vmem:[%s7] sm:$0xf]
        %v897 = vld [vmem:[%s7 + $0x4] sm:$0xf]
        %v898 = vld [vmem:[%s7 + $0x8] sm:$0xf]
        %v899 = vld [vmem:[%s7 + $0xc] sm:$0xf]
        %v904 = vunpack.c.l.b16 %v896
        %v905 = vunpack.c.l.b16 %v897
        %v906 = vunpack.c.l.b16 %v898
        %v907 = vunpack.c.l.b16 %v899
        %v908 = vpack.c.b16 %v905, %v904
        %v909 = vpack.c.b16 %v907, %v906
        %v913 = vsel %vm334, %v895, 0
        %915 = vmatprep.subr.bf16.mxu0 0
        %916 = vmatpush1.bf16.msra.mxu0 0
        %917 = vmatprep.subr.bf16.mxu0 0
        %918 = vmatpush1.bf16.msra.mxu0 0
        %919 = vmatprep.subr.bf16.mxu0 0
        %920 = vmatpush1.bf16.msra.mxu0 0
        %921 = vmatprep.subr.bf16.mxu0 0
        %922 = vmatpush1.bf16.msra.mxu0 0
        %923 = vmatprep.subr.bf16.mxu0 0
        %924 = vmatpush1.bf16.msra.mxu0 0
        %925 = vmatprep.subr.bf16.mxu0 0
        %926 = vmatpush1.bf16.msra.mxu0 0
        %927 = vmatprep.subr.bf16.mxu0 0
        %928 = vmatpush1.bf16.msra.mxu0 %v909
        %929 = vmatprep.subr.bf16.mxu0 0
        %930 = vmatpush1.bf16.msra.mxu0 %v908
        %931 = vmatprep.subr.bf16.mxu0 0
        %932 = vmatpush2.bf16.msra.mxu0 0
        %933 = vmatprep.subr.bf16.mxu0 0
        %934 = vmatpush2.bf16.msra.mxu0 0
        %935 = vmatprep.subr.bf16.mxu0 0
        %936 = vmatpush2.bf16.msra.mxu0 0
        %937 = vmatprep.subr.bf16.mxu0 0
        %938 = vmatpush2.bf16.msra.mxu0 0
        %939 = vmatprep.subr.bf16.mxu0 0
        %940 = vmatpush2.bf16.msra.mxu0 0
        %941 = vmatprep.subr.bf16.mxu0 0
        %942 = vmatpush2.bf16.msra.mxu0 0
        %943 = vmatprep.subr.bf16.mxu0 0
        %944 = vmatpush2.bf16.msra.mxu0 0
        %945 = vmatprep.subr.bf16.mxu0 0
        %946 = vmatpush2.bf16.msra.mxu0 0
        %947 = vmatprep.mubr.bf16.mxu0 0
        %948 = vmatmul.mubr.bf16.gmra.mxu0 %v913
        %v949 = vpop.f32.mrf.mxu0
        %v950 = vadd.f32 0.0, %v949
        %v951 = vpop.f32.mrf.mxu0
        %v952 = vpop.f32.mrf.mxu0
        %v953 = vpop.f32.mrf.mxu0
        %954 = vdwg.mxu0
        %v955 = vpack.c.bf16 %v950, %v950
        %vm956 = vcmask 257024
        %957 = vst.msk [vmem:[%s302] sm:$0xf] %vm956, %v955
        %s958 = sand.u32 %s198, 1
        %s959 = scalar_lea.sflag [#allocation5], %s958
        %s960 = sand.u32 %s198, 1
        %s961 = smul.addr %s960, 4
        %s962 = scalar_lea.vmem [#allocation4], %s961
        // Predicated region
        $region49: #{llama_attention.1} parent=47 // pred_check
          %p963 = pneg %p208
        $region50: #{llama_attention.1} parent=47 // pred_check_branch
          %965 = sbr.rel (%p963) target = $region52
        $region51: #{llama_attention.1} parent=47 // pred_region
          %s967 = ssub.s32 64, 64
          %968 = vsyncadd %s959, %s967
          %s969 = smul.addr %s28, 64
          %s970 = scalar_lea.hbm %s8, %s969
          %s972 = sshll.u32 %s962, 4
          %s973 = int_to_ptr.vmem [resolvable:$true] %s972
          %975 = dma.vmem_to_hbm [thread:$0]  %s973, 64, %s970, %s959
        $region52: #{llama_attention.1} parent=47 // pred_fallthru
          _
      $region48: #{llama_attention.1} parent=5 // pred_fallthru
        _
      %p976 = scmp.le.s32.totalorder 2, %s23
      // Predicated region
      $region53: #{llama_attention.1} parent=5 // pred_check
        %p977 = pneg %p976
      $region54: #{llama_attention.1} parent=5 // pred_check_branch
        %979 = sbr.rel (%p977) target = $region56
      $region55: #{llama_attention.1} parent=5 // pred_region
        %s980 = ssub.s32 %s23, 2
        // Predicated region
        $region57: #{llama_attention.1} parent=55 // pred_check
          %p981 = pneg %p214
        $region58: #{llama_attention.1} parent=55 // pred_check_branch
          %983 = sbr.rel (%p981) target = $region60
        $region59: #{llama_attention.1} parent=55 // pred_region
          %s984 = sand.u32 %s199, 1
          %s985 = scalar_lea.sflag [#allocation5], %s984
          %s986 = sand.u32 %s199, 1
          %s987 = smul.addr %s986, 4
          %s988 = scalar_lea.vmem [#allocation4], %s987
          %989 = dma.done %s985, 64
        $region60: #{llama_attention.1} parent=55 // pred_fallthru
          _
      $region56: #{llama_attention.1} parent=5 // pred_fallthru
        _
    $region6: #{llama_attention.1} parent=1 // loop_footer
      %s27 = sadd.s32 1, %s23
    $region7: #{llama_attention.1} parent=1 // loop_footer_branch
      %22 = sbr.rel target = $region3
    $region8: #{llama_attention.1} parent=1 // loop_exit
      _
    %990 = vsyncpa [#allocation5], 1
    %s991 = scalar_lea.sflag [#allocation5], 1
    %992 = vsyncpa %s991, 1

</llo_original>
